<compile_context>
chip_gen: v7x
topology: tpu7x:2x2x1
jax: 0.10.0
libtpu: 0.0.40
codegen_flags: <defaults>
</compile_context>

<pallas_src>
import functools

import jax
import jax.numpy as jnp
from jax.experimental import pallas as pl
from jax.experimental.pallas import tpu as pltpu


_VMEM_LIMIT = 32 * 1024 * 1024  # safe on v5e / v6e / v7x


# --------------------------------------------------------------------------
# Kernels
# --------------------------------------------------------------------------
def _qkv_projection_kernel(v_ref, k_ref, q_ref, wv_ref, wk_ref, wq_ref,
                           vp_ref, kp_ref, qp_ref, *, mxu_dtype):
    """Fused per-head projections via block-diagonal (E, E) weights.

    x_ref blocks: (R_blk, E); w_ref blocks: (E, E) = kron(I_H, W.T), so a
    single lane-dense matmul applies the shared (D, D) linear to every head.
    """
    def proj(x_ref, w_ref, o_ref):
        x = x_ref[...].astype(mxu_dtype)
        w = w_ref[...].astype(mxu_dtype)
        o_ref[...] = jnp.dot(x, w,
                             preferred_element_type=jnp.float32).astype(o_ref.dtype)

    proj(v_ref, wv_ref, vp_ref)
    proj(k_ref, wk_ref, kp_ref)
    proj(q_ref, wq_ref, qp_ref)


def _attention_kernel(q_ref, k_ref, v_ref, o_ref, *, scale, mxu_dtype):
    """Batched attention over a block of (batch*head) groups.

    Refs: (G_blk, T, D).  Softmax math stays f32 (v5e has no bf16 VPU/EUP);
    matmuls feed the MXU in `mxu_dtype`.
    """
    q = q_ref[...].astype(mxu_dtype)
    k = k_ref[...].astype(mxu_dtype)
    v = v_ref[...].astype(mxu_dtype)

    # energy[g, q, k] = sum_d Q[g, q, d] * K[g, k, d]   (single batched dot)
    energy = jnp.einsum('gqd,gkd->gqk', q, k,
                        preferred_element_type=jnp.float32) * scale

    # Softmax over the key axis.
    m = jnp.max(energy, axis=-1, keepdims=True)
    p = jnp.exp(energy - m)
    denom = jnp.sum(p, axis=-1, keepdims=True)
    attn = p * pl.reciprocal(denom, approx=True)   # EUP vrcp slot -> ~free

    out = jnp.einsum('gqk,gkd->gqd', attn.astype(mxu_dtype), v,
                     preferred_element_type=jnp.float32)
    o_ref[...] = out.astype(o_ref.dtype)


def _fc_out_kernel(x_ref, w_ref, b_ref, o_ref, *, mxu_dtype):
    """out = concat(heads) @ Wo.T + bo   (Wo.T pre-transposed in the wrapper)."""
    x = x_ref[...].astype(mxu_dtype)
    w = w_ref[...].astype(mxu_dtype)
    out = jnp.dot(x, w, preferred_element_type=jnp.float32) + b_ref[...]
    o_ref[...] = out.astype(o_ref.dtype)


# --------------------------------------------------------------------------
# Block-size selection helpers
# --------------------------------------------------------------------------
def _pick_row_block(rows, cap=512):
    """Largest multiple-of-8 divisor of `rows` <= cap, aiming for >= 2 grid
    steps; falls back to the full dim (always a legal block shape)."""
    target = min(cap, rows if rows < 16 else max(8, rows // 2))
    best = None
    for d in range(1, rows + 1):
        if rows % d == 0 and d % 8 == 0 and d <= target:
            best = d
    return best if best is not None else rows


def _pick_group_block(g, t, d, vmem_budget=4 * 1024 * 1024):
    """Largest divisor of g whose f32 working set fits the VMEM budget,
    capped at g // 2 so the grid has >= 2 steps (v7x megacore sharding)."""
    per_group = 4 * (8 * t * d + 2 * t * t)   # dbl-buffered I/O + energy/probs
    cap = max(1, min(g // 2 if g >= 2 else g, vmem_budget // per_group))
    best = 1
    for dd in range(1, g + 1):
        if g % dd == 0 and dd <= cap:
            best = dd
    return best


# --------------------------------------------------------------------------
# Wrapper
# --------------------------------------------------------------------------
def tself_attention(values, keys, query, params, *, heads,
                    mxu_dtype=jnp.float32):
    """Pallas TPU implementation of TSelfAttention.forward.

    values, keys, query: (N, T, E) f32; params = (Wv, Wk, Wq, Wo, bo) with
    nn.Linear layout (W is (out, in), y = x @ W.T).  Use
    mxu_dtype=jnp.bfloat16 on v6e/v7x for the fast MXU path (softmax and
    accumulation stay f32).
    """
    N, T, E = query.shape
    D = E // heads
    assert D * heads == E, "Embedding size needs to be divisible by heads"
    wv, wk, wq, wo, bo = params

    # ---- One-time weight preprocessing (transposes hoisted out of kernels).
    eye_h = jnp.eye(heads, dtype=wv.dtype)
    wv_bd = jnp.kron(eye_h, wv.T)        # (E, E) block-diagonal of Wv.T
    wk_bd = jnp.kron(eye_h, wk.T)
    wq_bd = jnp.kron(eye_h, wq.T)
    wo_t = wo.T                           # (E, E)
    bo2d = bo.reshape(1, E)

    rows = N * T
    r_blk = _pick_row_block(rows)
    row_spec = pl.BlockSpec((r_blk, E), lambda r: (r, 0))
    wfull_spec = pl.BlockSpec((E, E), lambda r: (0, 0))
    bias_spec = pl.BlockSpec((1, E), lambda r: (0, 0))
    row_params = pltpu.CompilerParams(dimension_semantics=("parallel",),
                                      vmem_limit_bytes=_VMEM_LIMIT)

    v2 = values.reshape(rows, E)
    k2 = keys.reshape(rows, E)
    q2 = query.reshape(rows, E)

    # ---- Kernel 1: fused, lane-dense Q/K/V projections ----------------------
    vp, kp, qp = pl.pallas_call(
        functools.partial(_qkv_projection_kernel, mxu_dtype=mxu_dtype),
        out_shape=(jax.ShapeDtypeStruct((rows, E), query.dtype),) * 3,
        grid_spec=pltpu.PrefetchScalarGridSpec(
            num_scalar_prefetch=0,
            grid=(rows // r_blk,),
            in_specs=[row_spec, row_spec, row_spec,
                      wfull_spec, wfull_spec, wfull_spec],
            out_specs=[row_spec, row_spec, row_spec],
        ),
        compiler_params=row_params,
    )(v2, k2, q2, wv_bd, wk_bd, wq_bd)

    # ---- Wrapper-side layout plumbing: (N*T, E) -> (N*H, T, D) groups -------
    def to_groups(x):
        return (x.reshape(N, T, heads, D)
                  .transpose(0, 2, 1, 3)
                  .reshape(N * heads, T, D))

    qg, kg, vg = to_groups(qp), to_groups(kp), to_groups(vp)

    # ---- Kernel 2: batched attention over (batch*head) groups ---------------
    G = N * heads
    g_blk = _pick_group_block(G, T, D)
    grp_spec = pl.BlockSpec((g_blk, T, D), lambda g: (g, 0, 0))
    og = pl.pallas_call(
        functools.partial(_attention_kernel, scale=1.0 / (E ** 0.5),
                          mxu_dtype=mxu_dtype),
        out_shape=jax.ShapeDtypeStruct((G, T, D), query.dtype),
        grid_spec=pltpu.PrefetchScalarGridSpec(
            num_scalar_prefetch=0,
            grid=(G // g_blk,),
            in_specs=[grp_spec, grp_spec, grp_spec],
            out_specs=grp_spec,
        ),
        compiler_params=pltpu.CompilerParams(
            dimension_semantics=("parallel",),
            vmem_limit_bytes=_VMEM_LIMIT),
    )(qg, kg, vg)

    # ---- Back to (N*T, E): heads re-interleaved along the feature axis ------
    concat = (og.reshape(N, heads, T, D)
                .transpose(0, 2, 1, 3)
                .reshape(rows, E))

    # ---- Kernel 3: output projection (fc_out) --------------------------------
    out2 = pl.pallas_call(
        functools.partial(_fc_out_kernel, mxu_dtype=mxu_dtype),
        out_shape=jax.ShapeDtypeStruct((rows, E), query.dtype),
        grid_spec=pltpu.PrefetchScalarGridSpec(
            num_scalar_prefetch=0,
            grid=(rows // r_blk,),
            in_specs=[row_spec, wfull_spec, bias_spec],
            out_specs=row_spec,
        ),
        compiler_params=row_params,
    )(concat, wo_t, bo2d)

    return out2.reshape(N, T, E)


# --------------------------------------------------------------------------
# Pure-JAX reference (mirrors the PyTorch forward exactly)
# --------------------------------------------------------------------------
def _reference(values, keys, query, params, *, heads):
    N, T, E = query.shape
    D = E // heads
    wv, wk, wq, wo, bo = params
    v = values.reshape(N, T, heads, D) @ wv.T
    k = keys.reshape(N, T, heads, D) @ wk.T
    q = query.reshape(N, T, heads, D) @ wq.T
    energy = jnp.einsum('nqhd,nkhd->nqkh', q, k)
    attn = jax.nn.softmax(energy / (E ** 0.5), axis=2)
    out = jnp.einsum('nqkh,nkhd->nqhd', attn, v).reshape(N, T, E)
    return out @ wo.T + bo


if __name__ == "__main__":
    # Small shapes consistent with the module: batch=2, seq=8, embed=32, heads=4
    N, T, E, H = 2, 8, 32, 4
    D = E // H

    key = jax.random.PRNGKey(0)
    kv, kk, kq, kwv, kwk, kwq, kwo, kbo = jax.random.split(key, 8)

    values = jax.random.normal(kv, (N, T, E), dtype=jnp.float32)
    keys_x = jax.random.normal(kk, (N, T, E), dtype=jnp.float32)
    query = jax.random.normal(kq, (N, T, E), dtype=jnp.float32)

    # nn.Linear shapes: weight (out, in), bias (out,)
    wv = jax.random.normal(kwv, (D, D), dtype=jnp.float32) * 0.1
    wk = jax.random.normal(kwk, (D, D), dtype=jnp.float32) * 0.1
    wq = jax.random.normal(kwq, (D, D), dtype=jnp.float32) * 0.1
    wo = jax.random.normal(kwo, (E, E), dtype=jnp.float32) * 0.1
    bo = jax.random.normal(kbo, (E,), dtype=jnp.float32) * 0.1
    params = (wv, wk, wq, wo, bo)

    ref = _reference(values, keys_x, query, params, heads=H)

    # f32 MXU path (portable; v5e-friendly).  Tolerance accounts for the
    # approximate EUP reciprocal in the softmax denominator.
    out_f32 = jax.block_until_ready(
        tself_attention(values, keys_x, query, params, heads=H,
                        mxu_dtype=jnp.float32))
    assert out_f32.shape == (N, T, E)
    assert jnp.allclose(out_f32, ref, atol=5e-3, rtol=5e-3), "f32 mismatch"

    # bf16 MXU path (v6e/v7x fast path); softmax/accumulation stay f32.
    out_bf16 = jax.block_until_ready(
        tself_attention(values, keys_x, query, params, heads=H,
                        mxu_dtype=jnp.bfloat16))
    assert jnp.allclose(out_bf16, ref, atol=3e-2, rtol=3e-2), "bf16 mismatch"

    print("KERNEL_OK")
</pallas_src>

<mosaic_0001>
module attributes {stable_mosaic.version = 11 : i64} {
  func.func @_qkv_projection_kernel(%arg0: i32, %arg1: memref<8x32xf32, #tpu.memory_space<vmem>>, %arg2: memref<8x32xf32, #tpu.memory_space<vmem>>, %arg3: memref<8x32xf32, #tpu.memory_space<vmem>>, %arg4: memref<32x32xf32, #tpu.memory_space<vmem>>, %arg5: memref<32x32xf32, #tpu.memory_space<vmem>>, %arg6: memref<32x32xf32, #tpu.memory_space<vmem>>, %arg7: memref<8x32xf32, #tpu.memory_space<vmem>>, %arg8: memref<8x32xf32, #tpu.memory_space<vmem>>, %arg9: memref<8x32xf32, #tpu.memory_space<vmem>>) attributes {dimension_semantics = [#tpu.dimension_semantics<parallel>], iteration_bounds = array<i64: 2>, scalar_prefetch = 0 : i64, scratch_operands = 0 : i64, tpu.core_type = #tpu.core_type<tc>, window_params = [{transform_indices = @transform_0, window_bounds = array<i64: 8, 32>}, {transform_indices = @transform_1, window_bounds = array<i64: 8, 32>}, {transform_indices = @transform_2, window_bounds = array<i64: 8, 32>}, {pipeline_mode = #tpu.pipeline_mode<synchronous>, transform_indices = @transform_3, window_bounds = array<i64: 32, 32>}, {pipeline_mode = #tpu.pipeline_mode<synchronous>, transform_indices = @transform_4, window_bounds = array<i64: 32, 32>}, {pipeline_mode = #tpu.pipeline_mode<synchronous>, transform_indices = @transform_5, window_bounds = array<i64: 32, 32>}, {transform_indices = @transform_6, window_bounds = array<i64: 8, 32>}, {transform_indices = @transform_7, window_bounds = array<i64: 8, 32>}, {transform_indices = @transform_8, window_bounds = array<i64: 8, 32>}]} {
    %c0 = arith.constant 0 : index
    %c0_0 = arith.constant 0 : index
    %0 = vector.load %arg1[%c0, %c0_0] : memref<8x32xf32, #tpu.memory_space<vmem>>, vector<8x32xf32>
    %c0_1 = arith.constant 0 : index
    %c0_2 = arith.constant 0 : index
    %1 = vector.load %arg4[%c0_1, %c0_2] : memref<32x32xf32, #tpu.memory_space<vmem>>, vector<32x32xf32>
    %cst = arith.constant dense<0.000000e+00> : vector<8x32xf32>
    %2 = tpu.matmul %0, %1, %cst {dimension_numbers = #tpu.dot_dimension_numbers<[1], [0], [0], [1], [0, 0, 1, 1], [], []>} : vector<8x32xf32>, vector<32x32xf32>, vector<8x32xf32> -> vector<8x32xf32>
    %c0_3 = arith.constant 0 : index
    %c0_4 = arith.constant 0 : index
    %3 = vector.load %arg7[%c0_3, %c0_4] : memref<8x32xf32, #tpu.memory_space<vmem>>, vector<8x32xf32>
    tpu.vector_store %arg7[%c0_3, %c0_4], %2 {strides = array<i32>} : memref<8x32xf32, #tpu.memory_space<vmem>>, vector<8x32xf32>,
    %c0_5 = arith.constant 0 : index
    %c0_6 = arith.constant 0 : index
    %4 = vector.load %arg2[%c0_5, %c0_6] : memref<8x32xf32, #tpu.memory_space<vmem>>, vector<8x32xf32>
    %c0_7 = arith.constant 0 : index
    %c0_8 = arith.constant 0 : index
    %5 = vector.load %arg5[%c0_7, %c0_8] : memref<32x32xf32, #tpu.memory_space<vmem>>, vector<32x32xf32>
    %cst_9 = arith.constant dense<0.000000e+00> : vector<8x32xf32>
    %6 = tpu.matmul %4, %5, %cst_9 {dimension_numbers = #tpu.dot_dimension_numbers<[1], [0], [0], [1], [0, 0, 1, 1], [], []>} : vector<8x32xf32>, vector<32x32xf32>, vector<8x32xf32> -> vector<8x32xf32>
    %c0_10 = arith.constant 0 : index
    %c0_11 = arith.constant 0 : index
    %7 = vector.load %arg8[%c0_10, %c0_11] : memref<8x32xf32, #tpu.memory_space<vmem>>, vector<8x32xf32>
    tpu.vector_store %arg8[%c0_10, %c0_11], %6 {strides = array<i32>} : memref<8x32xf32, #tpu.memory_space<vmem>>, vector<8x32xf32>,
    %c0_12 = arith.constant 0 : index
    %c0_13 = arith.constant 0 : index
    %8 = vector.load %arg3[%c0_12, %c0_13] : memref<8x32xf32, #tpu.memory_space<vmem>>, vector<8x32xf32>
    %c0_14 = arith.constant 0 : index
    %c0_15 = arith.constant 0 : index
    %9 = vector.load %arg6[%c0_14, %c0_15] : memref<32x32xf32, #tpu.memory_space<vmem>>, vector<32x32xf32>
    %cst_16 = arith.constant dense<0.000000e+00> : vector<8x32xf32>
    %10 = tpu.matmul %8, %9, %cst_16 {dimension_numbers = #tpu.dot_dimension_numbers<[1], [0], [0], [1], [0, 0, 1, 1], [], []>} : vector<8x32xf32>, vector<32x32xf32>, vector<8x32xf32> -> vector<8x32xf32>
    %c0_17 = arith.constant 0 : index
    %c0_18 = arith.constant 0 : index
    %11 = vector.load %arg9[%c0_17, %c0_18] : memref<8x32xf32, #tpu.memory_space<vmem>>, vector<8x32xf32>
    tpu.vector_store %arg9[%c0_17, %c0_18], %10 {strides = array<i32>} : memref<8x32xf32, #tpu.memory_space<vmem>>, vector<8x32xf32>,
    return
  }
  func.func @transform_0(%arg0: i32) -> (i32, i32) {
    %c0_i32 = arith.constant 0 : i32
    %c0_i32_0 = arith.constant 0 : i32
    return %arg0, %c0_i32 : i32, i32
  }
  func.func @transform_1(%arg0: i32) -> (i32, i32) {
    %c0_i32 = arith.constant 0 : i32
    %c0_i32_0 = arith.constant 0 : i32
    return %arg0, %c0_i32 : i32, i32
  }
  func.func @transform_2(%arg0: i32) -> (i32, i32) {
    %c0_i32 = arith.constant 0 : i32
    %c0_i32_0 = arith.constant 0 : i32
    return %arg0, %c0_i32 : i32, i32
  }
  func.func @transform_3(%arg0: i32) -> (i32, i32) {
    %c0_i32 = arith.constant 0 : i32
    %c0_i32_0 = arith.constant 0 : i32
    %c0_i32_1 = arith.constant 0 : i32
    return %c0_i32, %c0_i32_0 : i32, i32
  }
  func.func @transform_4(%arg0: i32) -> (i32, i32) {
    %c0_i32 = arith.constant 0 : i32
    %c0_i32_0 = arith.constant 0 : i32
    %c0_i32_1 = arith.constant 0 : i32
    return %c0_i32, %c0_i32_0 : i32, i32
  }
  func.func @transform_5(%arg0: i32) -> (i32, i32) {
    %c0_i32 = arith.constant 0 : i32
    %c0_i32_0 = arith.constant 0 : i32
    %c0_i32_1 = arith.constant 0 : i32
    return %c0_i32, %c0_i32_0 : i32, i32
  }
  func.func @transform_6(%arg0: i32) -> (i32, i32) {
    %c0_i32 = arith.constant 0 : i32
    %c0_i32_0 = arith.constant 0 : i32
    return %arg0, %c0_i32 : i32, i32
  }
  func.func @transform_7(%arg0: i32) -> (i32, i32) {
    %c0_i32 = arith.constant 0 : i32
    %c0_i32_0 = arith.constant 0 : i32
    return %arg0, %c0_i32 : i32, i32
  }
  func.func @transform_8(%arg0: i32) -> (i32, i32) {
    %c0_i32 = arith.constant 0 : i32
    %c0_i32_0 = arith.constant 0 : i32
    return %arg0, %c0_i32 : i32, i32
  }
}

</mosaic_0001>

<llo_original>
// kernel: tpu_custom_call.1
$region0: #{tpu_custom_call.1}
  #allocation0 [shape = 'u32[]', space=smem, size = 0x4, offset = 0x4, fixed_abs, tag = 'smem constant byte address 0x4 - core index']
  #allocation1 [shape = 'u32[144,128]{1,0:T(1,128)}', space=vmem, size = 0x12000, scoped, tag = 'internal scratch']
  %s0 = inlined_call_operand.hbm [shape: f32[16,32], index: 0, kind: input, shape index: {}]
  %s1 = inlined_call_operand.hbm [shape: f32[16,32], index: 1, kind: input, shape index: {}]
  %s2 = inlined_call_operand.hbm [shape: f32[16,32], index: 2, kind: input, shape index: {}]
  %s3 = inlined_call_operand.hbm [shape: f32[32,32], index: 3, kind: input, shape index: {}]
  %s4 = inlined_call_operand.hbm [shape: f32[32,32], index: 4, kind: input, shape index: {}]
  %s5 = inlined_call_operand.hbm [shape: f32[32,32], index: 5, kind: input, shape index: {}]
  %s6 = inlined_call_operand.hbm [shape: f32[16,32], index: 6, kind: output, shape index: {0}]
  %s7 = inlined_call_operand.hbm [shape: f32[16,32], index: 7, kind: output, shape index: {1}]
  %s8 = inlined_call_operand.hbm [shape: f32[16,32], index: 8, kind: output, shape index: {2}]
  %9 = xla_tuple %s6, %s7, %s8
  %s10 = sld [smem:[#allocation0]]
  $region97: #{tpu_custom_call.1} parent=0
    _
  %s12 = ssub.s32 1, %s10
  %s13 = scalar_select 0, %s12, %s10
  $region1: #{tpu_custom_call.1} parent=0
    #allocation2 [shape = 'u8[8192]{0}', space=vmem, size = 0x2000, scoped, tag = 'input window, operand 0']
    #allocation3 [shape = 's32[2]{0}', space=sflag, size = 0x8, scoped, tag = 'scoped memory for tpu_custom_call.1']
    #allocation4 [shape = 's32[2]{0}', space=sflag, size = 0x8, scoped, tag = 'scoped memory for tpu_custom_call.1']
    #allocation5 [shape = 'u8[8192]{0}', space=vmem, size = 0x2000, scoped, tag = 'input window, operand 1']
    #allocation6 [shape = 's32[2]{0}', space=sflag, size = 0x8, scoped, tag = 'scoped memory for tpu_custom_call.1']
    #allocation7 [shape = 'u8[8192]{0}', space=vmem, size = 0x2000, scoped, tag = 'input window, operand 2']
    #allocation8 [shape = 'u8[16384]{0}', space=vmem, size = 0x4000, scoped, tag = 'input window, operand 3, single buffered']
    #allocation9 [shape = 's32[1]{0}', space=sflag, size = 0x4, scoped, tag = 'scoped memory for tpu_custom_call.1']
    #allocation10 [shape = 'u8[16384]{0}', space=vmem, size = 0x4000, scoped, tag = 'input window, operand 4, single buffered']
    #allocation11 [shape = 'u8[16384]{0}', space=vmem, size = 0x4000, scoped, tag = 'input window, operand 5, single buffered']
    #allocation12 [shape = 's32[1]{0}', space=sflag, size = 0x4, scoped, tag = 'scoped memory for tpu_custom_call.1']
    #allocation13 [shape = 'u8[8192]{0}', space=vmem, size = 0x2000, scoped, tag = 'output window, operand 0']
    #allocation14 [shape = 'u8[8192]{0}', space=vmem, size = 0x2000, scoped, tag = 'output window, operand 1']
    #allocation15 [shape = 's32[2]{0}', space=sflag, size = 0x8, scoped, tag = 'scoped memory for tpu_custom_call.1']
    #allocation16 [shape = 'u8[8192]{0}', space=vmem, size = 0x2000, scoped, tag = 'output window, operand 2']
    %14 = vsyncpa [#allocation3], 0
    %s15 = scalar_lea.sflag [#allocation3], 1
    %16 = vsyncpa %s15, 0
    %17 = vsyncpa [#allocation6], 0
    %s18 = scalar_lea.sflag [#allocation6], 1
    %19 = vsyncpa %s18, 0
    %20 = vsyncpa [#allocation9], 0
    %21 = vsyncpa [#allocation12], 0
    %22 = vsyncpa [#allocation4], 0
    %s23 = scalar_lea.sflag [#allocation4], 1
    %24 = vsyncpa %s23, 0
    %25 = vsyncpa [#allocation15], 0
    %s26 = scalar_lea.sflag [#allocation15], 1
    %27 = vsyncpa %s26, 0
    loop: start=0, step=1, limit=4
    $region2: #{tpu_custom_call.1} parent=1 // loop_pre_header
      _
    $region3: #{tpu_custom_call.1} parent=1 // loop_header
      %s29 = sphi 0, %s33
      %p30 = scmp.ge.s32.totalorder %s29, 4
      %s39 = sphi 0, %s41
      %s42 = sphi 0, %s39
      %s43 = sphi 0, %s42
      %s59 = sphi 0, %s43
      %s65 = sphi 0, %s67
      %s68 = sphi 0, %s65
      %s69 = sphi 0, %s68
      %s85 = sphi 0, %s69
      %s91 = sphi 0, %s93
      %s94 = sphi 0, %s91
      %s95 = sphi 0, %s94
      %s111 = sphi 0, %s95
      %s115 = sphi 0, %s115
      %s117 = sphi 0, %s115
      %s118 = sphi 0, %s117
      %s132 = sphi 0, %s118
      %s136 = sphi 0, %s136
      %s138 = sphi 0, %s136
      %s139 = sphi 0, %s138
      %s153 = sphi 0, %s139
      %s157 = sphi 0, %s157
      %s159 = sphi 0, %s157
      %s160 = sphi 0, %s159
      %s174 = sphi 0, %s160
      %s180 = sphi 0, %s182
      %s183 = sphi 0, %s180
      %s184 = sphi 0, %s183
      %s200 = sphi 0, %s184
      %s206 = sphi 0, %s208
      %s209 = sphi 0, %s206
      %s210 = sphi 0, %s209
      %s226 = sphi 0, %s210
      %s232 = sphi 0, %s234
      %s235 = sphi 0, %s232
      %s236 = sphi 0, %s235
      %s252 = sphi 0, %s236
    $region4: #{tpu_custom_call.1} parent=1 // loop_header_branch
      %32 = sbr.rel (%p30) target = $region8
    $region5: #{tpu_custom_call.1} parent=1 // loop_body
      %s34 = ssub.s32 %s29, 1
      %s35 = ssub.s32 %s29, 2
      %s36 = sadd.s32 %s29, 1
      %s37 = ssub.s32 %s29, %s36
      %p38 = scmp.eq.s32.totalorder %s37, 0
      %s40 = sadd.s32 %s39, 1
      %s41 = scalar_select %p38, %s39, %s40
      %p44 = pneg %p38
      %p45 = scmp.eq.s32.totalorder %s29, 1
      %p46 = por %p44, %p45
      %p47 = scmp.ne.s32.totalorder %s39, %s42
      %p48 = scmp.eq.s32.totalorder %s29, 0
      %p49 = por %p47, %p48
      %p50 = scmp.ne.s32.totalorder %s39, %s42
      %p51 = scmp.eq.s32.totalorder %s34, 1
      %p52 = por %p50, %p51
      %p53 = scmp.ne.s32.totalorder %s42, %s43
      %p54 = scmp.eq.s32.totalorder %s34, 0
      %p55 = por %p53, %p54
      %p56 = scmp.ne.s32.totalorder %s42, %s43
      %p57 = scmp.eq.s32.totalorder %s35, 1
      %p58 = por %p56, %p57
      %p60 = scmp.ne.s32.totalorder %s43, %s59
      %p61 = scmp.eq.s32.totalorder %s35, 0
      %p62 = por %p60, %p61
      %s63 = ssub.s32 %s29, %s36
      %p64 = scmp.eq.s32.totalorder %s63, 0
      %s66 = sadd.s32 %s65, 1
      %s67 = scalar_select %p64, %s65, %s66
      %p70 = pneg %p64
      %p71 = scmp.eq.s32.totalorder %s29, 1
      %p72 = por %p70, %p71
      %p73 = scmp.ne.s32.totalorder %s65, %s68
      %p74 = scmp.eq.s32.totalorder %s29, 0
      %p75 = por %p73, %p74
      %p76 = scmp.ne.s32.totalorder %s65, %s68
      %p77 = scmp.eq.s32.totalorder %s34, 1
      %p78 = por %p76, %p77
      %p79 = scmp.ne.s32.totalorder %s68, %s69
      %p80 = scmp.eq.s32.totalorder %s34, 0
      %p81 = por %p79, %p80
      %p82 = scmp.ne.s32.totalorder %s68, %s69
      %p83 = scmp.eq.s32.totalorder %s35, 1
      %p84 = por %p82, %p83
      %p86 = scmp.ne.s32.totalorder %s69, %s85
      %p87 = scmp.eq.s32.totalorder %s35, 0
      %p88 = por %p86, %p87
      %s89 = ssub.s32 %s29, %s36
      %p90 = scmp.eq.s32.totalorder %s89, 0
      %s92 = sadd.s32 %s91, 1
      %s93 = scalar_select %p90, %s91, %s92
      %p96 = pneg %p90
      %p97 = scmp.eq.s32.totalorder %s29, 1
      %p98 = por %p96, %p97
      %p99 = scmp.ne.s32.totalorder %s91, %s94
      %p100 = scmp.eq.s32.totalorder %s29, 0
      %p101 = por %p99, %p100
      %p102 = scmp.ne.s32.totalorder %s91, %s94
      %p103 = scmp.eq.s32.totalorder %s34, 1
      %p104 = por %p102, %p103
      %p105 = scmp.ne.s32.totalorder %s94, %s95
      %p106 = scmp.eq.s32.totalorder %s34, 0
      %p107 = por %p105, %p106
      %p108 = scmp.ne.s32.totalorder %s94, %s95
      %p109 = scmp.eq.s32.totalorder %s35, 1
      %p110 = por %p108, %p109
      %p112 = scmp.ne.s32.totalorder %s95, %s111
      %p113 = scmp.eq.s32.totalorder %s35, 0
      %p114 = por %p112, %p113
      %s116 = sadd.s32 %s115, 1
      %p119 = scmp.eq.s32.totalorder %s29, 1
      %p120 = scmp.ne.s32.totalorder %s115, %s117
      %p121 = scmp.eq.s32.totalorder %s29, 0
      %p122 = por %p120, %p121
      %p123 = scmp.ne.s32.totalorder %s115, %s117
      %p124 = scmp.eq.s32.totalorder %s34, 1
      %p125 = por %p123, %p124
      %p126 = scmp.ne.s32.totalorder %s117, %s118
      %p127 = scmp.eq.s32.totalorder %s34, 0
      %p128 = por %p126, %p127
      %p129 = scmp.ne.s32.totalorder %s117, %s118
      %p130 = scmp.eq.s32.totalorder %s35, 1
      %p131 = por %p129, %p130
      %p133 = scmp.ne.s32.totalorder %s118, %s132
      %p134 = scmp.eq.s32.totalorder %s35, 0
      %p135 = por %p133, %p134
      %s137 = sadd.s32 %s136, 1
      %p140 = scmp.eq.s32.totalorder %s29, 1
      %p141 = scmp.ne.s32.totalorder %s136, %s138
      %p142 = scmp.eq.s32.totalorder %s29, 0
      %p143 = por %p141, %p142
      %p144 = scmp.ne.s32.totalorder %s136, %s138
      %p145 = scmp.eq.s32.totalorder %s34, 1
      %p146 = por %p144, %p145
      %p147 = scmp.ne.s32.totalorder %s138, %s139
      %p148 = scmp.eq.s32.totalorder %s34, 0
      %p149 = por %p147, %p148
      %p150 = scmp.ne.s32.totalorder %s138, %s139
      %p151 = scmp.eq.s32.totalorder %s35, 1
      %p152 = por %p150, %p151
      %p154 = scmp.ne.s32.totalorder %s139, %s153
      %p155 = scmp.eq.s32.totalorder %s35, 0
      %p156 = por %p154, %p155
      %s158 = sadd.s32 %s157, 1
      %p161 = scmp.eq.s32.totalorder %s29, 1
      %p162 = scmp.ne.s32.totalorder %s157, %s159
      %p163 = scmp.eq.s32.totalorder %s29, 0
      %p164 = por %p162, %p163
      %p165 = scmp.ne.s32.totalorder %s157, %s159
      %p166 = scmp.eq.s32.totalorder %s34, 1
      %p167 = por %p165, %p166
      %p168 = scmp.ne.s32.totalorder %s159, %s160
      %p169 = scmp.eq.s32.totalorder %s34, 0
      %p170 = por %p168, %p169
      %p171 = scmp.ne.s32.totalorder %s159, %s160
      %p172 = scmp.eq.s32.totalorder %s35, 1
      %p173 = por %p171, %p172
      %p175 = scmp.ne.s32.totalorder %s160, %s174
      %p176 = scmp.eq.s32.totalorder %s35, 0
      %p177 = por %p175, %p176
      %s178 = ssub.s32 %s29, %s36
      %p179 = scmp.eq.s32.totalorder %s178, 0
      %s181 = sadd.s32 %s180, 1
      %s182 = scalar_select %p179, %s180, %s181
      %p185 = pneg %p179
      %p186 = scmp.eq.s32.totalorder %s29, 1
      %p187 = por %p185, %p186
      %p188 = scmp.ne.s32.totalorder %s180, %s183
      %p189 = scmp.eq.s32.totalorder %s29, 0
      %p190 = por %p188, %p189
      %p191 = scmp.ne.s32.totalorder %s180, %s183
      %p192 = scmp.eq.s32.totalorder %s34, 1
      %p193 = por %p191, %p192
      %p194 = scmp.ne.s32.totalorder %s183, %s184
      %p195 = scmp.eq.s32.totalorder %s34, 0
      %p196 = por %p194, %p195
      %p197 = scmp.ne.s32.totalorder %s183, %s184
      %p198 = scmp.eq.s32.totalorder %s35, 1
      %p199 = por %p197, %p198
      %p201 = scmp.ne.s32.totalorder %s184, %s200
      %p202 = scmp.eq.s32.totalorder %s35, 0
      %p203 = por %p201, %p202
      %s204 = ssub.s32 %s29, %s36
      %p205 = scmp.eq.s32.totalorder %s204, 0
      %s207 = sadd.s32 %s206, 1
      %s208 = scalar_select %p205, %s206, %s207
      %p211 = pneg %p205
      %p212 = scmp.eq.s32.totalorder %s29, 1
      %p213 = por %p211, %p212
      %p214 = scmp.ne.s32.totalorder %s206, %s209
      %p215 = scmp.eq.s32.totalorder %s29, 0
      %p216 = por %p214, %p215
      %p217 = scmp.ne.s32.totalorder %s206, %s209
      %p218 = scmp.eq.s32.totalorder %s34, 1
      %p219 = por %p217, %p218
      %p220 = scmp.ne.s32.totalorder %s209, %s210
      %p221 = scmp.eq.s32.totalorder %s34, 0
      %p222 = por %p220, %p221
      %p223 = scmp.ne.s32.totalorder %s209, %s210
      %p224 = scmp.eq.s32.totalorder %s35, 1
      %p225 = por %p223, %p224
      %p227 = scmp.ne.s32.totalorder %s210, %s226
      %p228 = scmp.eq.s32.totalorder %s35, 0
      %p229 = por %p227, %p228
      %s230 = ssub.s32 %s29, %s36
      %p231 = scmp.eq.s32.totalorder %s230, 0
      %s233 = sadd.s32 %s232, 1
      %s234 = scalar_select %p231, %s232, %s233
      %p237 = pneg %p231
      %p238 = scmp.eq.s32.totalorder %s29, 1
      %p239 = por %p237, %p238
      %p240 = scmp.ne.s32.totalorder %s232, %s235
      %p241 = scmp.eq.s32.totalorder %s29, 0
      %p242 = por %p240, %p241
      %p243 = scmp.ne.s32.totalorder %s232, %s235
      %p244 = scmp.eq.s32.totalorder %s34, 1
      %p245 = por %p243, %p244
      %p246 = scmp.ne.s32.totalorder %s235, %s236
      %p247 = scmp.eq.s32.totalorder %s34, 0
      %p248 = por %p246, %p247
      %p249 = scmp.ne.s32.totalorder %s235, %s236
      %p250 = scmp.eq.s32.totalorder %s35, 1
      %p251 = por %p249, %p250
      %p253 = scmp.ne.s32.totalorder %s236, %s252
      %p254 = scmp.eq.s32.totalorder %s35, 0
      %p255 = por %p253, %p254
      %p256 = scmp.le.s32.totalorder 1, %s29
      %p257 = scmp.lt.s32.totalorder %s29, 3
      %p258 = pnand %p256, %p257
      %p259 = pneg %p258
      // Predicated region
      $region9: #{tpu_custom_call.1} parent=5 // pred_check
        _
      $region10: #{tpu_custom_call.1} parent=5 // pred_check_branch
        %261 = sbr.rel (%p258) target = $region12
      $region11: #{tpu_custom_call.1} parent=5 // pred_region
        %s262 = ssub.s32 %s29, 1
        // Predicated region
        $region13: #{tpu_custom_call.1} parent=11 // pred_check
          %p263 = pneg %p128
        $region14: #{tpu_custom_call.1} parent=11 // pred_check_branch
          %265 = sbr.rel (%p263) target = $region16
        $region15: #{tpu_custom_call.1} parent=11 // pred_region
          %s267 = ssub.s32 512, 512
          %268 = vsyncadd [#allocation9], %s267
          %s269 = sshll.u32 [#allocation8], 4
          %s270 = int_to_ptr.vmem [resolvable:$true] %s269
          %275 = dma.hbm_to_vmem [thread:$0]  %s3, 512, %s270, [#allocation9], 128, 128, 8
        $region16: #{tpu_custom_call.1} parent=11 // pred_fallthru
          _
        // Predicated region
        $region17: #{tpu_custom_call.1} parent=11 // pred_check
          %p276 = pneg %p149
        $region18: #{tpu_custom_call.1} parent=11 // pred_check_branch
          %278 = sbr.rel (%p276) target = $region20
        $region19: #{tpu_custom_call.1} parent=11 // pred_region
          %s280 = ssub.s32 512, 512
          %281 = vsyncadd [#allocation9], %s280
          %s282 = sshll.u32 [#allocation10], 4
          %s283 = int_to_ptr.vmem [resolvable:$true] %s282
          %288 = dma.hbm_to_vmem [thread:$0]  %s4, 512, %s283, [#allocation9], 128, 128, 8
        $region20: #{tpu_custom_call.1} parent=11 // pred_fallthru
          _
        // Predicated region
        $region21: #{tpu_custom_call.1} parent=11 // pred_check
          %p289 = pneg %p170
        $region22: #{tpu_custom_call.1} parent=11 // pred_check_branch
          %291 = sbr.rel (%p289) target = $region24
        $region23: #{tpu_custom_call.1} parent=11 // pred_region
          %s293 = ssub.s32 512, 512
          %294 = vsyncadd [#allocation12], %s293
          %s295 = sshll.u32 [#allocation11], 4
          %s296 = int_to_ptr.vmem [resolvable:$true] %s295
          %301 = dma.hbm_to_vmem [thread:$0]  %s5, 512, %s296, [#allocation12], 128, 128, 8
        $region24: #{tpu_custom_call.1} parent=11 // pred_fallthru
          _
      $region12: #{tpu_custom_call.1} parent=5 // pred_fallthru
        _
      %p302 = scmp.lt.s32.totalorder %s29, 2
      // Predicated region
      $region25: #{tpu_custom_call.1} parent=5 // pred_check
        %p303 = pneg %p302
      $region26: #{tpu_custom_call.1} parent=5 // pred_check_branch
        %305 = sbr.rel (%p303) target = $region28
      $region27: #{tpu_custom_call.1} parent=5 // pred_region
        // Predicated region
        $region29: #{tpu_custom_call.1} parent=27 // pred_check
          %p306 = pneg %p49
        $region30: #{tpu_custom_call.1} parent=27 // pred_check_branch
          %308 = sbr.rel (%p306) target = $region32
        $region31: #{tpu_custom_call.1} parent=27 // pred_region
          %s309 = sand.u32 %s39, 1
          %s310 = scalar_lea.sflag [#allocation3], %s309
          %s311 = sand.u32 %s39, 1
          %s312 = smul.addr %s311, 8
          %s313 = scalar_lea.vmem [#allocation2], %s312
          %s315 = ssub.s32 128, 128
          %316 = vsyncadd %s310, %s315
          %s317 = smul.addr %s29, 128
          %s318 = scalar_lea.hbm %s0, %s317
          %s320 = sshll.u32 %s313, 4
          %s321 = int_to_ptr.vmem [resolvable:$true] %s320
          %323 = dma.hbm_to_vmem [thread:$0]  %s318, 128, %s321, %s310
        $region32: #{tpu_custom_call.1} parent=27 // pred_fallthru
          _
        // Predicated region
        $region33: #{tpu_custom_call.1} parent=27 // pred_check
          %p324 = pneg %p75
        $region34: #{tpu_custom_call.1} parent=27 // pred_check_branch
          %326 = sbr.rel (%p324) target = $region36
        $region35: #{tpu_custom_call.1} parent=27 // pred_region
          %s327 = sand.u32 %s29, 1
          %s328 = scalar_lea.sflag [#allocation6], %s327
          %s329 = sand.u32 %s65, 1
          %s330 = smul.addr %s329, 8
          %s331 = scalar_lea.vmem [#allocation5], %s330
          %s333 = ssub.s32 128, 128
          %334 = vsyncadd %s328, %s333
          %s335 = smul.addr %s29, 128
          %s336 = scalar_lea.hbm %s1, %s335
          %s338 = sshll.u32 %s331, 4
          %s339 = int_to_ptr.vmem [resolvable:$true] %s338
          %341 = dma.hbm_to_vmem [thread:$0]  %s336, 128, %s339, %s328
        $region36: #{tpu_custom_call.1} parent=27 // pred_fallthru
          _
        // Predicated region
        $region37: #{tpu_custom_call.1} parent=27 // pred_check
          %p342 = pneg %p101
        $region38: #{tpu_custom_call.1} parent=27 // pred_check_branch
          %344 = sbr.rel (%p342) target = $region40
        $region39: #{tpu_custom_call.1} parent=27 // pred_region
          %s345 = sand.u32 %s29, 1
          %s346 = scalar_lea.sflag [#allocation6], %s345
          %s347 = sand.u32 %s91, 1
          %s348 = smul.addr %s347, 8
          %s349 = scalar_lea.vmem [#allocation7], %s348
          %s351 = ssub.s32 128, 128
          %352 = vsyncadd %s346, %s351
          %s353 = smul.addr %s29, 128
          %s354 = scalar_lea.hbm %s2, %s353
          %s356 = sshll.u32 %s349, 4
          %s357 = int_to_ptr.vmem [resolvable:$true] %s356
          %359 = dma.hbm_to_vmem [thread:$0]  %s354, 128, %s357, %s346
        $region40: #{tpu_custom_call.1} parent=27 // pred_fallthru
          _
      $region28: #{tpu_custom_call.1} parent=5 // pred_fallthru
        _
      %p360 = scmp.le.s32.totalorder 1, %s29
      %p361 = scmp.lt.s32.totalorder %s29, 3
      %p362 = pnand %p360, %p361
      %p363 = pneg %p362
      // Predicated region
      $region41: #{tpu_custom_call.1} parent=5 // pred_check
        _
      $region42: #{tpu_custom_call.1} parent=5 // pred_check_branch
        %365 = sbr.rel (%p362) target = $region44
      $region43: #{tpu_custom_call.1} parent=5 // pred_region
        %s366 = ssub.s32 %s29, 1
        %s367 = sand.u32 %s42, 1
        %s368 = scalar_lea.sflag [#allocation3], %s367
        %s369 = sand.u32 %s42, 1
        %s370 = smul.addr %s369, 8
        %s371 = scalar_lea.vmem [#allocation2], %s370
        // Predicated region
        $region45: #{tpu_custom_call.1} parent=43 // pred_check
          %p372 = pneg %p55
        $region46: #{tpu_custom_call.1} parent=43 // pred_check_branch
          %374 = sbr.rel (%p372) target = $region48
        $region47: #{tpu_custom_call.1} parent=43 // pred_region
          %375 = dma.done %s368, 128
        $region48: #{tpu_custom_call.1} parent=43 // pred_fallthru
          _
        %s376 = sand.u32 %s34, 1
        %s377 = scalar_lea.sflag [#allocation6], %s376
        %s378 = sand.u32 %s68, 1
        %s379 = smul.addr %s378, 8
        %s380 = scalar_lea.vmem [#allocation5], %s379
        // Predicated region
        $region49: #{tpu_custom_call.1} parent=43 // pred_check
          %p381 = pneg %p81
        $region50: #{tpu_custom_call.1} parent=43 // pred_check_branch
          %383 = sbr.rel (%p381) target = $region52
        $region51: #{tpu_custom_call.1} parent=43 // pred_region
          %384 = dma.done %s377, 128
        $region52: #{tpu_custom_call.1} parent=43 // pred_fallthru
          _
        %s385 = sand.u32 %s34, 1
        %s386 = scalar_lea.sflag [#allocation6], %s385
        %s387 = sand.u32 %s94, 1
        %s388 = smul.addr %s387, 8
        %s389 = scalar_lea.vmem [#allocation7], %s388
        // Predicated region
        $region53: #{tpu_custom_call.1} parent=43 // pred_check
          %p390 = pneg %p107
        $region54: #{tpu_custom_call.1} parent=43 // pred_check_branch
          %392 = sbr.rel (%p390) target = $region56
        $region55: #{tpu_custom_call.1} parent=43 // pred_region
          %393 = dma.done %s386, 128
        $region56: #{tpu_custom_call.1} parent=43 // pred_fallthru
          _
        // Predicated region
        $region57: #{tpu_custom_call.1} parent=43 // pred_check
          %p394 = pneg %p128
        $region58: #{tpu_custom_call.1} parent=43 // pred_check_branch
          %396 = sbr.rel (%p394) target = $region60
        $region59: #{tpu_custom_call.1} parent=43 // pred_region
          %397 = dma.done [#allocation9], 512
        $region60: #{tpu_custom_call.1} parent=43 // pred_fallthru
          _
        // Predicated region
        $region61: #{tpu_custom_call.1} parent=43 // pred_check
          %p398 = pneg %p149
        $region62: #{tpu_custom_call.1} parent=43 // pred_check_branch
          %400 = sbr.rel (%p398) target = $region64
        $region63: #{tpu_custom_call.1} parent=43 // pred_region
          %401 = dma.done [#allocation9], 512
        $region64: #{tpu_custom_call.1} parent=43 // pred_fallthru
          _
        // Predicated region
        $region65: #{tpu_custom_call.1} parent=43 // pred_check
          %p402 = pneg %p170
        $region66: #{tpu_custom_call.1} parent=43 // pred_check_branch
          %404 = sbr.rel (%p402) target = $region68
        $region67: #{tpu_custom_call.1} parent=43 // pred_region
          %405 = dma.done [#allocation12], 512
        $region68: #{tpu_custom_call.1} parent=43 // pred_fallthru
          _
        %s406 = sand.u32 %s42, 1
        %s407 = scalar_lea.sflag [#allocation3], %s406
        %s408 = sand.u32 %s42, 1
        %s409 = smul.addr %s408, 8
        %s410 = scalar_lea.vmem [#allocation2], %s409
        %p411 = pneg %p55
        %p412 = pneg %p52
        %s413 = sand.u32 %s34, 1
        %s414 = scalar_lea.sflag [#allocation6], %s413
        %s415 = sand.u32 %s68, 1
        %s416 = smul.addr %s415, 8
        %s417 = scalar_lea.vmem [#allocation5], %s416
        %p418 = pneg %p81
        %p419 = pneg %p78
        %s420 = sand.u32 %s34, 1
        %s421 = scalar_lea.sflag [#allocation6], %s420
        %s422 = sand.u32 %s94, 1
        %s423 = smul.addr %s422, 8
        %s424 = scalar_lea.vmem [#allocation7], %s423
        %p425 = pneg %p107
        %p426 = pneg %p104
        %p427 = pneg %p128
        %p428 = pneg %p125
        %p429 = pneg %p149
        %p430 = pneg %p146
        %p431 = pneg %p170
        %p432 = pneg %p167
        %p433 = pneg %p196
        %p434 = pneg %p193
        %s435 = sand.u32 %s183, 1
        %s436 = scalar_lea.sflag [#allocation4], %s435
        %s437 = sand.u32 %s183, 1
        %s438 = smul.addr %s437, 8
        %s439 = scalar_lea.vmem [#allocation13], %s438
        %p440 = pneg %p222
        %p441 = pneg %p219
        %s442 = sand.u32 %s34, 1
        %s443 = scalar_lea.sflag [#allocation15], %s442
        %s444 = sand.u32 %s209, 1
        %s445 = smul.addr %s444, 8
        %s446 = scalar_lea.vmem [#allocation14], %s445
        %p447 = pneg %p248
        %p448 = pneg %p245
        %s449 = sand.u32 %s34, 1
        %s450 = scalar_lea.sflag [#allocation15], %s449
        %s451 = sand.u32 %s235, 1
        %s452 = smul.addr %s451, 8
        %s453 = scalar_lea.vmem [#allocation16], %s452
        %v454 = vld [vmem:[%s371] sm:$0xff]
        %v455 = vld [vmem:[#allocation8] sm:$0xff]
        %v456 = vld [vmem:[#allocation8 + $0x8] sm:$0xff]
        %v457 = vld [vmem:[#allocation8 + $0x10] sm:$0xff]
        %v458 = vld [vmem:[#allocation8 + $0x18] sm:$0xff]
        %vm459 = vcmask 261120
        %v461 = vsel %vm459, %v454, 0
        %463 = vmatprep.subr.mxu0 0.0
        %464 = vmatpush1.msra.mxu0 %v455
        %465 = vmatprep.subr.mxu0 0.0
        %466 = vmatpush1.msra.mxu0 %v456
        %467 = vmatprep.subr.mxu0 0.0
        %468 = vmatpush1.msra.mxu0 %v457
        %469 = vmatprep.subr.mxu0 0.0
        %470 = vmatpush1.msra.mxu0 %v458
        %471 = vmatprep.subr.mxu0 0.0
        %472 = vmatpush1.msra.mxu0 0.0
        %473 = vmatprep.subr.mxu0 0.0
        %474 = vmatpush1.msra.mxu0 0.0
        %475 = vmatprep.subr.mxu0 0.0
        %476 = vmatpush1.msra.mxu0 0.0
        %477 = vmatprep.subr.mxu0 0.0
        %478 = vmatpush1.msra.mxu0 0.0
        %479 = vmatprep.subr.mxu0 0.0
        %480 = vmatpush1.msra.mxu0 0.0
        %481 = vmatprep.subr.mxu0 0.0
        %482 = vmatpush1.msra.mxu0 0.0
        %483 = vmatprep.subr.mxu0 0.0
        %484 = vmatpush1.msra.mxu0 0.0
        %485 = vmatprep.subr.mxu0 0.0
        %486 = vmatpush1.msra.mxu0 0.0
        %487 = vmatprep.subr.mxu0 0.0
        %488 = vmatpush1.msra.mxu0 0.0
        %489 = vmatprep.subr.mxu0 0.0
        %490 = vmatpush1.msra.mxu0 0.0
        %491 = vmatprep.subr.mxu0 0.0
        %492 = vmatpush1.msra.mxu0 0.0
        %493 = vmatprep.subr.mxu0 0.0
        %494 = vmatpush1.msra.mxu0 0.0
        %495 = vmatprep.subr.mxu0 0.0
        %496 = vmatpush1.msra.mxu0 0.0
        %497 = vmatprep.subr.mxu0 0.0
        %498 = vmatpush1.msra.mxu0 0.0
        %499 = vmatprep.subr.mxu0 0.0
        %500 = vmatpush1.msra.mxu0 0.0
        %501 = vmatprep.subr.mxu0 0.0
        %502 = vmatpush1.msra.mxu0 0.0
        %503 = vmatprep.subr.mxu0 0.0
        %504 = vmatpush1.msra.mxu0 0.0
        %505 = vmatprep.subr.mxu0 0.0
        %506 = vmatpush1.msra.mxu0 0.0
        %507 = vmatprep.subr.mxu0 0.0
        %508 = vmatpush1.msra.mxu0 0.0
        %509 = vmatprep.subr.mxu0 0.0
        %510 = vmatpush1.msra.mxu0 0.0
        %511 = vmatprep.subr.mxu0 0.0
        %512 = vmatpush1.msra.mxu0 0.0
        %513 = vmatprep.subr.mxu0 0.0
        %514 = vmatpush1.msra.mxu0 0.0
        %515 = vmatprep.subr.mxu0 0.0
        %516 = vmatpush1.msra.mxu0 0.0
        %517 = vmatprep.subr.mxu0 0.0
        %518 = vmatpush1.msra.mxu0 0.0
        %519 = vmatprep.subr.mxu0 0.0
        %520 = vmatpush1.msra.mxu0 0.0
        %521 = vmatprep.subr.mxu0 0.0
        %522 = vmatpush1.msra.mxu0 0.0
        %523 = vmatprep.subr.mxu0 0.0
        %524 = vmatpush1.msra.mxu0 0.0
        %525 = vmatprep.subr.mxu0 0.0
        %526 = vmatpush1.msra.mxu0 0.0
        %527 = vmatprep.mubr.f32.mxu0 0.0
        %528 = vmatmul.mubr.f32.gmra.mrb[0].mxu0 %v461
        %v529 = vpop.f32.mrb[0].mxu0
        %v530 = vadd.f32 0.0, %v529
        %v531 = vpop.f32.mrb[0].mxu0
        %532 = vdwg.mxu0
        %533 = vst.msk [vmem:[%s439] sm:$0xff] %vm459, %v530
        %v534 = vld [vmem:[%s380] sm:$0xff]
        %v535 = vld [vmem:[#allocation10] sm:$0xff]
        %v536 = vld [vmem:[#allocation10 + $0x8] sm:$0xff]
        %v537 = vld [vmem:[#allocation10 + $0x10] sm:$0xff]
        %v538 = vld [vmem:[#allocation10 + $0x18] sm:$0xff]
        %v540 = vsel %vm459, %v534, 0
        %542 = vmatprep.subr.mxu0 0.0
        %543 = vmatpush1.msra.mxu0 %v535
        %544 = vmatprep.subr.mxu0 0.0
        %545 = vmatpush1.msra.mxu0 %v536
        %546 = vmatprep.subr.mxu0 0.0
        %547 = vmatpush1.msra.mxu0 %v537
        %548 = vmatprep.subr.mxu0 0.0
        %549 = vmatpush1.msra.mxu0 %v538
        %550 = vmatprep.subr.mxu0 0.0
        %551 = vmatpush1.msra.mxu0 0.0
        %552 = vmatprep.subr.mxu0 0.0
        %553 = vmatpush1.msra.mxu0 0.0
        %554 = vmatprep.subr.mxu0 0.0
        %555 = vmatpush1.msra.mxu0 0.0
        %556 = vmatprep.subr.mxu0 0.0
        %557 = vmatpush1.msra.mxu0 0.0
        %558 = vmatprep.subr.mxu0 0.0
        %559 = vmatpush1.msra.mxu0 0.0
        %560 = vmatprep.subr.mxu0 0.0
        %561 = vmatpush1.msra.mxu0 0.0
        %562 = vmatprep.subr.mxu0 0.0
        %563 = vmatpush1.msra.mxu0 0.0
        %564 = vmatprep.subr.mxu0 0.0
        %565 = vmatpush1.msra.mxu0 0.0
        %566 = vmatprep.subr.mxu0 0.0
        %567 = vmatpush1.msra.mxu0 0.0
        %568 = vmatprep.subr.mxu0 0.0
        %569 = vmatpush1.msra.mxu0 0.0
        %570 = vmatprep.subr.mxu0 0.0
        %571 = vmatpush1.msra.mxu0 0.0
        %572 = vmatprep.subr.mxu0 0.0
        %573 = vmatpush1.msra.mxu0 0.0
        %574 = vmatprep.subr.mxu0 0.0
        %575 = vmatpush1.msra.mxu0 0.0
        %576 = vmatprep.subr.mxu0 0.0
        %577 = vmatpush1.msra.mxu0 0.0
        %578 = vmatprep.subr.mxu0 0.0
        %579 = vmatpush1.msra.mxu0 0.0
        %580 = vmatprep.subr.mxu0 0.0
        %581 = vmatpush1.msra.mxu0 0.0
        %582 = vmatprep.subr.mxu0 0.0
        %583 = vmatpush1.msra.mxu0 0.0
        %584 = vmatprep.subr.mxu0 0.0
        %585 = vmatpush1.msra.mxu0 0.0
        %586 = vmatprep.subr.mxu0 0.0
        %587 = vmatpush1.msra.mxu0 0.0
        %588 = vmatprep.subr.mxu0 0.0
        %589 = vmatpush1.msra.mxu0 0.0
        %590 = vmatprep.subr.mxu0 0.0
        %591 = vmatpush1.msra.mxu0 0.0
        %592 = vmatprep.subr.mxu0 0.0
        %593 = vmatpush1.msra.mxu0 0.0
        %594 = vmatprep.subr.mxu0 0.0
        %595 = vmatpush1.msra.mxu0 0.0
        %596 = vmatprep.subr.mxu0 0.0
        %597 = vmatpush1.msra.mxu0 0.0
        %598 = vmatprep.subr.mxu0 0.0
        %599 = vmatpush1.msra.mxu0 0.0
        %600 = vmatprep.subr.mxu0 0.0
        %601 = vmatpush1.msra.mxu0 0.0
        %602 = vmatprep.subr.mxu0 0.0
        %603 = vmatpush1.msra.mxu0 0.0
        %604 = vmatprep.subr.mxu0 0.0
        %605 = vmatpush1.msra.mxu0 0.0
        %606 = vmatprep.mubr.f32.mxu0 0.0
        %607 = vmatmul.mubr.f32.gmra.mrb[0].mxu0 %v540
        %v608 = vpop.f32.mrb[0].mxu0
        %v609 = vadd.f32 0.0, %v608
        %v610 = vpop.f32.mrb[0].mxu0
        %611 = vdwg.mxu0
        %612 = vst.msk [vmem:[%s446] sm:$0xff] %vm459, %v609
        %v613 = vld [vmem:[%s389] sm:$0xff]
        %v614 = vld [vmem:[#allocation11] sm:$0xff]
        %v615 = vld [vmem:[#allocation11 + $0x8] sm:$0xff]
        %v616 = vld [vmem:[#allocation11 + $0x10] sm:$0xff]
        %v617 = vld [vmem:[#allocation11 + $0x18] sm:$0xff]
        %v619 = vsel %vm459, %v613, 0
        %621 = vmatprep.subr.mxu0 0.0
        %622 = vmatpush1.msra.mxu0 %v614
        %623 = vmatprep.subr.mxu0 0.0
        %624 = vmatpush1.msra.mxu0 %v615
        %625 = vmatprep.subr.mxu0 0.0
        %626 = vmatpush1.msra.mxu0 %v616
        %627 = vmatprep.subr.mxu0 0.0
        %628 = vmatpush1.msra.mxu0 %v617
        %629 = vmatprep.subr.mxu0 0.0
        %630 = vmatpush1.msra.mxu0 0.0
        %631 = vmatprep.subr.mxu0 0.0
        %632 = vmatpush1.msra.mxu0 0.0
        %633 = vmatprep.subr.mxu0 0.0
        %634 = vmatpush1.msra.mxu0 0.0
        %635 = vmatprep.subr.mxu0 0.0
        %636 = vmatpush1.msra.mxu0 0.0
        %637 = vmatprep.subr.mxu0 0.0
        %638 = vmatpush1.msra.mxu0 0.0
        %639 = vmatprep.subr.mxu0 0.0
        %640 = vmatpush1.msra.mxu0 0.0
        %641 = vmatprep.subr.mxu0 0.0
        %642 = vmatpush1.msra.mxu0 0.0
        %643 = vmatprep.subr.mxu0 0.0
        %644 = vmatpush1.msra.mxu0 0.0
        %645 = vmatprep.subr.mxu0 0.0
        %646 = vmatpush1.msra.mxu0 0.0
        %647 = vmatprep.subr.mxu0 0.0
        %648 = vmatpush1.msra.mxu0 0.0
        %649 = vmatprep.subr.mxu0 0.0
        %650 = vmatpush1.msra.mxu0 0.0
        %651 = vmatprep.subr.mxu0 0.0
        %652 = vmatpush1.msra.mxu0 0.0
        %653 = vmatprep.subr.mxu0 0.0
        %654 = vmatpush1.msra.mxu0 0.0
        %655 = vmatprep.subr.mxu0 0.0
        %656 = vmatpush1.msra.mxu0 0.0
        %657 = vmatprep.subr.mxu0 0.0
        %658 = vmatpush1.msra.mxu0 0.0
        %659 = vmatprep.subr.mxu0 0.0
        %660 = vmatpush1.msra.mxu0 0.0
        %661 = vmatprep.subr.mxu0 0.0
        %662 = vmatpush1.msra.mxu0 0.0
        %663 = vmatprep.subr.mxu0 0.0
        %664 = vmatpush1.msra.mxu0 0.0
        %665 = vmatprep.subr.mxu0 0.0
        %666 = vmatpush1.msra.mxu0 0.0
        %667 = vmatprep.subr.mxu0 0.0
        %668 = vmatpush1.msra.mxu0 0.0
        %669 = vmatprep.subr.mxu0 0.0
        %670 = vmatpush1.msra.mxu0 0.0
        %671 = vmatprep.subr.mxu0 0.0
        %672 = vmatpush1.msra.mxu0 0.0
        %673 = vmatprep.subr.mxu0 0.0
        %674 = vmatpush1.msra.mxu0 0.0
        %675 = vmatprep.subr.mxu0 0.0
        %676 = vmatpush1.msra.mxu0 0.0
        %677 = vmatprep.subr.mxu0 0.0
        %678 = vmatpush1.msra.mxu0 0.0
        %679 = vmatprep.subr.mxu0 0.0
        %680 = vmatpush1.msra.mxu0 0.0
        %681 = vmatprep.subr.mxu0 0.0
        %682 = vmatpush1.msra.mxu0 0.0
        %683 = vmatprep.subr.mxu0 0.0
        %684 = vmatpush1.msra.mxu0 0.0
        %685 = vmatprep.mubr.f32.mxu0 0.0
        %686 = vmatmul.mubr.f32.gmra.mrb[0].mxu0 %v619
        %v687 = vpop.f32.mrb[0].mxu0
        %v688 = vadd.f32 0.0, %v687
        %v689 = vpop.f32.mrb[0].mxu0
        %690 = vdwg.mxu0
        %691 = vst.msk [vmem:[%s453] sm:$0xff] %vm459, %v688
        %s692 = sand.u32 %s183, 1
        %s693 = scalar_lea.sflag [#allocation4], %s692
        %s694 = sand.u32 %s183, 1
        %s695 = smul.addr %s694, 8
        %s696 = scalar_lea.vmem [#allocation13], %s695
        %s697 = sand.u32 %s34, 1
        %s698 = scalar_lea.sflag [#allocation15], %s697
        %s699 = sand.u32 %s209, 1
        %s700 = smul.addr %s699, 8
        %s701 = scalar_lea.vmem [#allocation14], %s700
        %s702 = sand.u32 %s34, 1
        %s703 = scalar_lea.sflag [#allocation15], %s702
        %s704 = sand.u32 %s235, 1
        %s705 = smul.addr %s704, 8
        %s706 = scalar_lea.vmem [#allocation16], %s705
        // Predicated region
        $region69: #{tpu_custom_call.1} parent=43 // pred_check
          %p707 = pneg %p193
        $region70: #{tpu_custom_call.1} parent=43 // pred_check_branch
          %709 = sbr.rel (%p707) target = $region72
        $region71: #{tpu_custom_call.1} parent=43 // pred_region
          %s711 = ssub.s32 128, 128
          %712 = vsyncadd %s693, %s711
          %s713 = smul.addr %s34, 128
          %s714 = scalar_lea.hbm %s6, %s713
          %s716 = sshll.u32 %s696, 4
          %s717 = int_to_ptr.vmem [resolvable:$true] %s716
          %719 = dma.vmem_to_hbm [thread:$0]  %s717, 128, %s714, %s693
        $region72: #{tpu_custom_call.1} parent=43 // pred_fallthru
          _
        // Predicated region
        $region73: #{tpu_custom_call.1} parent=43 // pred_check
          %p720 = pneg %p219
        $region74: #{tpu_custom_call.1} parent=43 // pred_check_branch
          %722 = sbr.rel (%p720) target = $region76
        $region75: #{tpu_custom_call.1} parent=43 // pred_region
          %s724 = ssub.s32 128, 128
          %725 = vsyncadd %s698, %s724
          %s726 = smul.addr %s34, 128
          %s727 = scalar_lea.hbm %s7, %s726
          %s729 = sshll.u32 %s701, 4
          %s730 = int_to_ptr.vmem [resolvable:$true] %s729
          %732 = dma.vmem_to_hbm [thread:$0]  %s730, 128, %s727, %s698
        $region76: #{tpu_custom_call.1} parent=43 // pred_fallthru
          _
        // Predicated region
        $region77: #{tpu_custom_call.1} parent=43 // pred_check
          %p733 = pneg %p245
        $region78: #{tpu_custom_call.1} parent=43 // pred_check_branch
          %735 = sbr.rel (%p733) target = $region80
        $region79: #{tpu_custom_call.1} parent=43 // pred_region
          %s737 = ssub.s32 128, 128
          %738 = vsyncadd %s703, %s737
          %s739 = smul.addr %s34, 128
          %s740 = scalar_lea.hbm %s8, %s739
          %s742 = sshll.u32 %s706, 4
          %s743 = int_to_ptr.vmem [resolvable:$true] %s742
          %745 = dma.vmem_to_hbm [thread:$0]  %s743, 128, %s740, %s703
        $region80: #{tpu_custom_call.1} parent=43 // pred_fallthru
          _
      $region44: #{tpu_custom_call.1} parent=5 // pred_fallthru
        _
      %p746 = scmp.le.s32.totalorder 2, %s29
      // Predicated region
      $region81: #{tpu_custom_call.1} parent=5 // pred_check
        %p747 = pneg %p746
      $region82: #{tpu_custom_call.1} parent=5 // pred_check_branch
        %749 = sbr.rel (%p747) target = $region84
      $region83: #{tpu_custom_call.1} parent=5 // pred_region
        %s750 = ssub.s32 %s29, 2
        // Predicated region
        $region85: #{tpu_custom_call.1} parent=83 // pred_check
          %p751 = pneg %p199
        $region86: #{tpu_custom_call.1} parent=83 // pred_check_branch
          %753 = sbr.rel (%p751) target = $region88
        $region87: #{tpu_custom_call.1} parent=83 // pred_region
          %s754 = sand.u32 %s184, 1
          %s755 = scalar_lea.sflag [#allocation4], %s754
          %s756 = sand.u32 %s184, 1
          %s757 = smul.addr %s756, 8
          %s758 = scalar_lea.vmem [#allocation13], %s757
          %759 = dma.done %s755, 128
        $region88: #{tpu_custom_call.1} parent=83 // pred_fallthru
          _
        // Predicated region
        $region89: #{tpu_custom_call.1} parent=83 // pred_check
          %p760 = pneg %p225
        $region90: #{tpu_custom_call.1} parent=83 // pred_check_branch
          %762 = sbr.rel (%p760) target = $region92
        $region91: #{tpu_custom_call.1} parent=83 // pred_region
          %s763 = sand.u32 %s35, 1
          %s764 = scalar_lea.sflag [#allocation15], %s763
          %s765 = sand.u32 %s210, 1
          %s766 = smul.addr %s765, 8
          %s767 = scalar_lea.vmem [#allocation14], %s766
          %768 = dma.done %s764, 128
        $region92: #{tpu_custom_call.1} parent=83 // pred_fallthru
          _
        // Predicated region
        $region93: #{tpu_custom_call.1} parent=83 // pred_check
          %p769 = pneg %p251
        $region94: #{tpu_custom_call.1} parent=83 // pred_check_branch
          %771 = sbr.rel (%p769) target = $region96
        $region95: #{tpu_custom_call.1} parent=83 // pred_region
          %s772 = sand.u32 %s35, 1
          %s773 = scalar_lea.sflag [#allocation15], %s772
          %s774 = sand.u32 %s236, 1
          %s775 = smul.addr %s774, 8
          %s776 = scalar_lea.vmem [#allocation16], %s775
          %777 = dma.done %s773, 128
        $region96: #{tpu_custom_call.1} parent=83 // pred_fallthru
          _
      $region84: #{tpu_custom_call.1} parent=5 // pred_fallthru
        _
    $region6: #{tpu_custom_call.1} parent=1 // loop_footer
      %s33 = sadd.s32 1, %s29
    $region7: #{tpu_custom_call.1} parent=1 // loop_footer_branch
      %28 = sbr.rel target = $region3
    $region8: #{tpu_custom_call.1} parent=1 // loop_exit
      _
    %778 = vsyncpa [#allocation3], 1
    %s779 = scalar_lea.sflag [#allocation3], 1
    %780 = vsyncpa %s779, 1
    %781 = vsyncpa [#allocation6], 1
    %s782 = scalar_lea.sflag [#allocation6], 1
    %783 = vsyncpa %s782, 1
    %784 = vsyncpa [#allocation9], 1
    %785 = vsyncpa [#allocation12], 1
    %786 = vsyncpa [#allocation4], 1
    %s787 = scalar_lea.sflag [#allocation4], 1
    %788 = vsyncpa %s787, 1
    %789 = vsyncpa [#allocation15], 1
    %s790 = scalar_lea.sflag [#allocation15], 1
    %791 = vsyncpa %s790, 1

</llo_original>
